<compile_context>
chip_gen: v7x
topology: tpu7x:2x2x1
jax: 0.10.0
libtpu: 0.0.40
codegen_flags: <defaults>
</compile_context>

<pallas_src>
import functools

import jax
import jax.numpy as jnp
from jax.experimental import pallas as pl
from jax.experimental.pallas import tpu as pltpu


# --------------------------------------------------------------------------
# Tile / VMEM budgeting
# --------------------------------------------------------------------------
def _round_down(x: int, m: int) -> int:
    return (x // m) * m


def _vmem_limit_bytes() -> int:
    """Scoped-VMEM budget to request, derived from the chip when possible."""
    cap = None
    try:
        cap = getattr(pltpu.get_tpu_info(), "vmem_capacity_bytes", None)
    except Exception:
        cap = None
    if not cap:
        cap = 64 * 1024 * 1024  # conservative: v7x has 64 MiB per TensorCore
    # ~3/4 of physical, capped at 64 MiB: 48 MiB on v7x, 64 MiB on v5e/v6e.
    # Always above v5e's 16 MiB scoped default.
    return max(16 * 1024 * 1024, min((cap * 3) // 4, 64 * 1024 * 1024))


def _choose_tiles(B, C, itemsize, vmem_limit, block_b=None, block_c=None):
    lane = 128
    sub = 16 if itemsize <= 2 else 8       # sublane multiple (bf16 packs 16)

    # ---- class tile: whole row unless C is huge, then flash-tile the classes.
    if block_c is None:
        tc = C if C <= 8192 else 8192      # 8192 is a multiple of 128
    else:
        tc = min(block_c, C)
        if tc < C:
            tc = max(lane, _round_down(tc, lane))

    # ---- batch tile: budget the *real* steady-state VMEM per batch row:
    #        2 x input tile (double-buffered)            : 2 * tc * itemsize
    #        f32 headroom for compiler/vreg temporaries  : 4 * tc
    #        m, l accumulators + 2x output block, each padded to 128 f32 lanes
    if block_b is None:
        per_row = tc * (2 * itemsize + 4) + 4 * lane * 4
        budget = (vmem_limit * 3) // 4     # leave headroom for internal scratch
        tb = budget // per_row
        # Per-buffer input tile beyond ~16 MiB shows no measurable roofline gain.
        tb = min(tb, (16 * 1024 * 1024) // max(tc * itemsize, 1))
        tb = min(tb, 4096)
    else:
        tb = block_b

    if tb >= B:
        tb = B                             # full dim is always a legal block dim
    else:
        tb = max(sub, _round_down(tb, sub))

    # Guarantee >= 2 batch tiles when B allows it so the "parallel" batch axis
    # shards across both TensorCores on multi-TC parts (v7x); on single-TC parts
    # the extra grid step costs ~0.35 us and improves pipelining.
    if B >= 2 * sub:
        tb = min(tb, max(sub, _round_down((B + 1) // 2, sub)))
    return tb, max(1, tc)


# --------------------------------------------------------------------------
# Kernel
# --------------------------------------------------------------------------
def _contrastive_loss_kernel(x_ref, o_ref, m_ref, l_ref, *, valid_last, ragged):
    """Flash-style online logsumexp over class tiles; per-row CE vs class 0."""
    ci = pl.program_id(1)
    nc = pl.num_programs(1)

    @pl.when(ci == 0)
    def _init():
        m_ref[...] = jnp.full(m_ref.shape, -jnp.inf, jnp.float32)
        l_ref[...] = jnp.zeros(l_ref.shape, jnp.float32)
        # Stash the target-class (0) logits in the output block (folded scratch).
        o_ref[...] = x_ref[:, 0:1].astype(jnp.float32)

    def _update(x):
        # Max in the input dtype (packed bf16 VPU on v6e/v7x); cast->sub->exp
        # fuses per vreg, so no staged full-tile f32 copy hits VMEM.
        m_prev = m_ref[...]
        m_new = jnp.maximum(
            m_prev, jnp.max(x, axis=-1, keepdims=True).astype(jnp.float32))
        # exp(-inf - finite) == 0 makes the ci == 0 step exact.
        l_ref[...] = l_ref[...] * jnp.exp(m_prev - m_new) + jnp.sum(
            jnp.exp(x.astype(jnp.float32) - m_new), axis=-1, keepdims=True)
        m_ref[...] = m_new

    if ragged:
        # Steady state: no mask ops at all.
        @pl.when(ci < nc - 1)
        def _steady():
            _update(x_ref[...])

        # Last (ragged) class tile only: mask the out-of-range columns.
        @pl.when(ci == nc - 1)
        def _last():
            col = jax.lax.broadcasted_iota(jnp.int32, x_ref.shape, 1)
            fill = jnp.array(-jnp.inf, x_ref.dtype)
            _update(jnp.where(col < valid_last, x_ref[...], fill))
    else:
        _update(x_ref[...])

    @pl.when(ci == nc - 1)
    def _finalize():
        # Per-row loss; rows of a ragged last batch tile are garbage but are
        # dropped by Pallas on writeback.
        o_ref[...] = m_ref[...] + jnp.log(l_ref[...]) - o_ref[...]


# --------------------------------------------------------------------------
# Wrapper
# --------------------------------------------------------------------------
def _reduce(per_row, reduction):
    if reduction == "mean":
        return jnp.mean(per_row)
    if reduction == "sum":
        return jnp.sum(per_row)
    if reduction == "none":
        return per_row
    raise ValueError(f"unsupported reduction: {reduction}")


def _reference_per_row(inputs):
    x = inputs.astype(jnp.float32)
    lse = jax.scipy.special.logsumexp(x, axis=-1)
    return lse - x[:, 0]


def _reference_loss(inputs, reduction="mean"):
    return _reduce(_reference_per_row(inputs), reduction)


def contrastive_loss(inputs, reduction="mean", *, block_b=None, block_c=None,
                     force_pallas=False):
    """inputs: (B, C) logits. CrossEntropy against all-zero targets."""
    if inputs.ndim != 2:
        raise ValueError(f"expected (batch, classes) logits, got {inputs.shape}")
    B, C = inputs.shape

    # Tiny problems: pallas_call dispatch + per-step overhead >> actual work.
    if not force_pallas and B * C <= 16384:
        return _reduce(_reference_per_row(inputs), reduction)

    itemsize = jnp.dtype(inputs.dtype).itemsize
    vmem_limit = _vmem_limit_bytes()
    tb, tc = _choose_tiles(B, C, itemsize, vmem_limit, block_b, block_c)
    nb, nc = pl.cdiv(B, tb), pl.cdiv(C, tc)
    valid_last = C % tc                    # columns valid in the last class tile
    ragged = valid_last != 0               # ragged => nc >= 2 (tc <= C always)

    kernel = functools.partial(_contrastive_loss_kernel,
                               valid_last=valid_last, ragged=ragged)

    cost = pl.CostEstimate(
        flops=int(5 * B * C),
        transcendentals=int(B * C),
        bytes_accessed=int(B * C * itemsize + 4 * B),
    )

    per_row = pl.pallas_call(
        kernel,
        out_shape=jax.ShapeDtypeStruct((B, 1), jnp.float32),
        grid_spec=pltpu.PrefetchScalarGridSpec(
            num_scalar_prefetch=0,
            grid=(nb, nc),
            in_specs=[pl.BlockSpec((tb, tc), lambda bi, ci: (bi, ci))],
            out_specs=pl.BlockSpec((tb, 1), lambda bi, ci: (bi, 0)),
            scratch_shapes=[
                pltpu.VMEM((tb, 1), jnp.float32),   # running max  m
                pltpu.VMEM((tb, 1), jnp.float32),   # running sum  l
            ],
        ),
        compiler_params=pltpu.CompilerParams(
            dimension_semantics=("parallel", "arbitrary"),
            vmem_limit_bytes=vmem_limit,
        ),
        cost_estimate=cost,
    )(inputs)

    return _reduce(per_row[:, 0], reduction)


# --------------------------------------------------------------------------
# Self-test
# --------------------------------------------------------------------------
if __name__ == "__main__":
    key = jax.random.PRNGKey(0)
    k1, k2, k3 = jax.random.split(key, 3)

    # 1) Tiny shape matching the original module's scale.
    #    Default path falls back to pure-jnp; also force the Pallas path.
    x_small = jax.random.normal(k1, (8, 32), dtype=jnp.float32)
    loss_small = contrastive_loss(x_small)
    loss_small_pl = contrastive_loss(x_small, force_pallas=True)
    jax.block_until_ready((loss_small, loss_small_pl))
    ref_small = _reference_loss(x_small)
    assert jnp.allclose(loss_small, ref_small, rtol=1e-4, atol=1e-4), (loss_small, ref_small)
    assert jnp.allclose(loss_small_pl, ref_small, rtol=1e-4, atol=1e-4), (loss_small_pl, ref_small)

    # 2) Non-divisible shape with small forced tiles: exercises batch tiling,
    #    class-axis flash logsumexp, and last-tile-only ragged masking.
    x_ragged = jax.random.normal(k2, (100, 200), dtype=jnp.float32)
    loss_ragged = contrastive_loss(x_ragged, force_pallas=True, block_b=32, block_c=128)
    jax.block_until_ready(loss_ragged)
    ref_ragged = _reference_loss(x_ragged)
    assert jnp.allclose(loss_ragged, ref_ragged, rtol=1e-4, atol=1e-4), (loss_ragged, ref_ragged)

    # 3) bf16 logits at the HBM boundary (f32 accumulation inside the kernel).
    x_bf16 = jax.random.normal(k3, (256, 384), dtype=jnp.float32).astype(jnp.bfloat16)
    loss_bf16 = contrastive_loss(x_bf16, force_pallas=True)
    jax.block_until_ready(loss_bf16)
    ref_bf16 = _reference_loss(x_bf16)
    assert jnp.allclose(loss_bf16, ref_bf16, rtol=1e-3, atol=1e-3), (loss_bf16, ref_bf16)

    # 4) 'sum' and 'none' reductions.
    loss_sum = contrastive_loss(x_ragged, reduction="sum", force_pallas=True)
    loss_none = contrastive_loss(x_ragged, reduction="none", force_pallas=True)
    jax.block_until_ready((loss_sum, loss_none))
    assert jnp.allclose(loss_sum, _reference_loss(x_ragged, "sum"), rtol=1e-4, atol=1e-4)
    assert jnp.allclose(loss_none, _reference_per_row(x_ragged), rtol=1e-4, atol=1e-4)

    print("KERNEL_OK")
</pallas_src>

<mosaic_0001>
module attributes {stable_mosaic.version = 11 : i64} {
  func.func @_contrastive_loss_kernel(%arg0: i32, %arg1: i32, %arg2: memref<8x32xf32, #tpu.memory_space<vmem>>, %arg3: memref<8x1xf32, #tpu.memory_space<vmem>>, %arg4: memref<8x1xf32, #tpu.memory_space<vmem>>, %arg5: memref<8x1xf32, #tpu.memory_space<vmem>>) attributes {dimension_semantics = [#tpu.dimension_semantics<parallel>, #tpu.dimension_semantics<arbitrary>], iteration_bounds = array<i64: 1, 1>, scalar_prefetch = 0 : i64, scratch_operands = 2 : i64, tpu.core_type = #tpu.core_type<tc>, window_params = [{transform_indices = @transform_0, window_bounds = array<i64: 8, 32>}, {transform_indices = @transform_1, window_bounds = array<i64: 8, 1>}]} {
    %c0_i32 = arith.constant 0 : i32
    %0 = arith.cmpi eq, %arg1, %c0_i32 : i32
    %1 = arith.extui %0 : i1 to i32
    %c0_i32_0 = arith.constant 0 : i32
    %2 = arith.cmpi ne, %1, %c0_i32_0 : i32
    scf.if %2 {
      %cst_13 = arith.constant 0xFF800000 : f32
      %23 = vector.broadcast %cst_13 : f32 to vector<8x1xf32>
      %c0_14 = arith.constant 0 : index
      %c0_15 = arith.constant 0 : index
      %24 = vector.load %arg4[%c0_14, %c0_15] : memref<8x1xf32, #tpu.memory_space<vmem>>, vector<8x1xf32>
      tpu.vector_store %arg4[%c0_14, %c0_15], %23 {strides = array<i32>} : memref<8x1xf32, #tpu.memory_space<vmem>>, vector<8x1xf32>,
      %cst_16 = arith.constant 0.000000e+00 : f32
      %25 = vector.broadcast %cst_16 : f32 to vector<8x1xf32>
      %c0_17 = arith.constant 0 : index
      %c0_18 = arith.constant 0 : index
      %26 = vector.load %arg5[%c0_17, %c0_18] : memref<8x1xf32, #tpu.memory_space<vmem>>, vector<8x1xf32>
      tpu.vector_store %arg5[%c0_17, %c0_18], %25 {strides = array<i32>} : memref<8x1xf32, #tpu.memory_space<vmem>>, vector<8x1xf32>,
      %c0_19 = arith.constant 0 : index
      %c0_20 = arith.constant 0 : index
      %27 = vector.load %arg2[%c0_19, %c0_20] : memref<8x32xf32, #tpu.memory_space<vmem>>, vector<8x1xf32>
      %c0_21 = arith.constant 0 : index
      %c0_22 = arith.constant 0 : index
      %28 = vector.load %arg3[%c0_21, %c0_22] : memref<8x1xf32, #tpu.memory_space<vmem>>, vector<8x1xf32>
      tpu.vector_store %arg3[%c0_21, %c0_22], %27 {strides = array<i32>} : memref<8x1xf32, #tpu.memory_space<vmem>>, vector<8x1xf32>,
    } else {
    }
    %c0 = arith.constant 0 : index
    %c0_1 = arith.constant 0 : index
    %3 = vector.load %arg2[%c0, %c0_1] : memref<8x32xf32, #tpu.memory_space<vmem>>, vector<8x32xf32>
    %c0_2 = arith.constant 0 : index
    %c0_3 = arith.constant 0 : index
    %4 = vector.load %arg4[%c0_2, %c0_3] : memref<8x1xf32, #tpu.memory_space<vmem>>, vector<8x1xf32>
    %cst = arith.constant dense<0xFF800000> : vector<8xf32>
    %5 = vector.multi_reduction <maximumf>, %3, %cst [1] : vector<8x32xf32> to vector<8xf32>
    %6 = vector.shape_cast %5 : vector<8xf32> to vector<8x1xf32>
    %7 = arith.maximumf %4, %6 : vector<8x1xf32>
    %c0_4 = arith.constant 0 : index
    %c0_5 = arith.constant 0 : index
    %8 = vector.load %arg5[%c0_4, %c0_5] : memref<8x1xf32, #tpu.memory_space<vmem>>, vector<8x1xf32>
    %9 = arith.subf %4, %7 : vector<8x1xf32>
    %10 = math.exp %9 : vector<8x1xf32>
    %11 = arith.mulf %8, %10 : vector<8x1xf32>
    %12 = vector.broadcast %7 : vector<8x1xf32> to vector<8x32xf32>
    %13 = arith.subf %3, %12 : vector<8x32xf32>
    %14 = math.exp %13 : vector<8x32xf32>
    %cst_6 = arith.constant dense<0.000000e+00> : vector<8xf32>
    %15 = vector.multi_reduction <add>, %14, %cst_6 [1] : vector<8x32xf32> to vector<8xf32>
    %16 = vector.shape_cast %15 : vector<8xf32> to vector<8x1xf32>
    %17 = arith.addf %11, %16 : vector<8x1xf32>
    %c0_7 = arith.constant 0 : index
    %c0_8 = arith.constant 0 : index
    %18 = vector.load %arg5[%c0_7, %c0_8] : memref<8x1xf32, #tpu.memory_space<vmem>>, vector<8x1xf32>
    tpu.vector_store %arg5[%c0_7, %c0_8], %17 {strides = array<i32>} : memref<8x1xf32, #tpu.memory_space<vmem>>, vector<8x1xf32>,
    %c0_9 = arith.constant 0 : index
    %c0_10 = arith.constant 0 : index
    %19 = vector.load %arg4[%c0_9, %c0_10] : memref<8x1xf32, #tpu.memory_space<vmem>>, vector<8x1xf32>
    tpu.vector_store %arg4[%c0_9, %c0_10], %7 {strides = array<i32>} : memref<8x1xf32, #tpu.memory_space<vmem>>, vector<8x1xf32>,
    %c0_i32_11 = arith.constant 0 : i32
    %20 = arith.cmpi eq, %arg1, %c0_i32_11 : i32
    %21 = arith.extui %20 : i1 to i32
    %c0_i32_12 = arith.constant 0 : i32
    %22 = arith.cmpi ne, %21, %c0_i32_12 : i32
    scf.if %22 {
      %c0_13 = arith.constant 0 : index
      %c0_14 = arith.constant 0 : index
      %23 = vector.load %arg4[%c0_13, %c0_14] : memref<8x1xf32, #tpu.memory_space<vmem>>, vector<8x1xf32>
      %c0_15 = arith.constant 0 : index
      %c0_16 = arith.constant 0 : index
      %24 = vector.load %arg5[%c0_15, %c0_16] : memref<8x1xf32, #tpu.memory_space<vmem>>, vector<8x1xf32>
      %25 = math.log %24 : vector<8x1xf32>
      %26 = arith.addf %23, %25 : vector<8x1xf32>
      %c0_17 = arith.constant 0 : index
      %c0_18 = arith.constant 0 : index
      %27 = vector.load %arg3[%c0_17, %c0_18] : memref<8x1xf32, #tpu.memory_space<vmem>>, vector<8x1xf32>
      %28 = arith.subf %26, %27 : vector<8x1xf32>
      %c0_19 = arith.constant 0 : index
      %c0_20 = arith.constant 0 : index
      %29 = vector.load %arg3[%c0_19, %c0_20] : memref<8x1xf32, #tpu.memory_space<vmem>>, vector<8x1xf32>
      tpu.vector_store %arg3[%c0_19, %c0_20], %28 {strides = array<i32>} : memref<8x1xf32, #tpu.memory_space<vmem>>, vector<8x1xf32>,
    } else {
    }
    return
  }
  func.func @transform_0(%arg0: i32, %arg1: i32) -> (i32, i32) {
    %c0_i32 = arith.constant 0 : i32
    return %arg0, %arg1 : i32, i32
  }
  func.func @transform_1(%arg0: i32, %arg1: i32) -> (i32, i32) {
    %c0_i32 = arith.constant 0 : i32
    %c0_i32_0 = arith.constant 0 : i32
    return %arg0, %c0_i32 : i32, i32
  }
}

</mosaic_0001>

<llo_original>
// kernel: tpu_custom_call.1
$region0: #{tpu_custom_call.1}
  #allocation0 [shape = 'u32[]', space=smem, size = 0x4, offset = 0x4, fixed_abs, tag = 'smem constant byte address 0x4 - core index']
  #allocation1 [shape = 'u32[144,128]{1,0:T(1,128)}', space=vmem, size = 0x12000, scoped, tag = 'internal scratch']
  #allocation2 [shape = 'f32[8,1]{1,0:T(8,128)}', space=vmem, size = 0x1000, scoped, tag = 'scratch operand']
  #allocation3 [shape = 'f32[8,1]{1,0:T(8,128)}', space=vmem, size = 0x1000, scoped, tag = 'scratch operand']
  %s0 = inlined_call_operand.hbm [shape: f32[8,32], index: 0, kind: input, shape index: {}]
  %s1 = inlined_call_operand.vmem [shape: f32[8,1], index: 1, kind: output, shape index: {}]
  %s2 = sld [smem:[#allocation0]]
  $region26: #{tpu_custom_call.1} parent=0
    _
  %s4 = ssub.s32 1, %s2
  %s5 = scalar_select 0, %s4, %s2
  $region1: #{tpu_custom_call.1} parent=0
    #allocation4 [shape = 'u8[4096]{0}', space=vmem, size = 0x1000, scoped, tag = 'input window, operand 0, single buffered']
    #allocation5 [shape = 's32[1]{0}', space=sflag, size = 0x4, scoped, tag = 'scoped memory for tpu_custom_call.1']
    %6 = vsyncpa [#allocation5], 0
    // Predicated region
    $region2: #{tpu_custom_call.1} parent=1 // pred_check
      _
    $region3: #{tpu_custom_call.1} parent=1 // pred_check_branch
      %8 = sbr.rel (0) target = $region5
    $region4: #{tpu_custom_call.1} parent=1 // pred_region
      %s10 = ssub.s32 128, 128
      %11 = vsyncadd [#allocation5], %s10
      %s13 = sshll.u32 [#allocation4], 4
      %s14 = int_to_ptr.vmem [resolvable:$true] %s13
      %16 = dma.hbm_to_vmem [thread:$0]  %s0, 128, %s14, [#allocation5]
    $region5: #{tpu_custom_call.1} parent=1 // pred_fallthru
      _
    // Predicated region
    $region6: #{tpu_custom_call.1} parent=1 // pred_check
      _
    $region7: #{tpu_custom_call.1} parent=1 // pred_check_branch
      %18 = sbr.rel (0) target = $region9
    $region8: #{tpu_custom_call.1} parent=1 // pred_region
      %19 = dma.done [#allocation5], 128
    $region9: #{tpu_custom_call.1} parent=1 // pred_fallthru
      _
    %p20 = scmp.eq.s32.totalorder 0, 0
    // Predicated region
    $region10: #{tpu_custom_call.1} parent=1 // pred_check
      %p21 = pneg %p20
    $region11: #{tpu_custom_call.1} parent=1 // pred_check_branch
      %23 = sbr.rel (%p21) target = $region13
    $region12: #{tpu_custom_call.1} parent=1 // pred_region
      %vm24 = vcmask 7168
      %25 = vst.msk [vmem:[#allocation2] sm:$0xff] %vm24, -inf
      %26 = vst.msk [vmem:[#allocation3] sm:$0xff] %vm24, 0.0
      %v27 = vld [vmem:[#allocation4] sm:$0xff]
      %28 = vst.msk [vmem:[%s1] sm:$0xff] %vm24, %v27
    $region13: #{tpu_custom_call.1} parent=1 // pred_fallthru
      _
    %v29 = vld [vmem:[#allocation4] sm:$0xff]
    %v30 = vld [vmem:[#allocation2] sm:$0xff]
    %vm31 = vcmask 261120
    %v32 = vsel %vm31, %v29, -inf
    %33 = vmax.xlane.f32.xlu0 %v32
    %v34 = vpop.xlane.xlu0 %33
    %v35 = vmax.f32 %v30, %v34
    %v36 = vld [vmem:[#allocation3] sm:$0xff]
    %v37 = vsub.f32 %v30, %v35
    %v38 = vmul.f32 %v37, 1.442695
    %v39 = vpow.pop %v38
    %v40 = vmul.f32 %v36, %v39
    %42 = vset.pattern.permute.xlu0 0
    %43 = vperm.xlu0 %42, %v35
    %v44 = vpop.permute.xlu0 %43
    %v46 = vsub.f32 %v29, %v44
    %v47 = vmul.f32 %v46, 1.442695
    %v48 = vpow.pop %v47
    %v49 = vsel %vm31, %v48, 0.0
    %50 = vadd.xlane.f32.xlu0 %v49
    %v51 = vpop.xlane.xlu0 %50
    %v52 = vadd.f32 %v40, %v51
    %vm53 = vcmask 7168
    %54 = vst.msk [vmem:[#allocation3] sm:$0xff] %vm53, %v52
    %55 = vst.msk [vmem:[#allocation2] sm:$0xff] %vm53, %v35
    // Predicated region
    $region14: #{tpu_custom_call.1} parent=1 // pred_check
      %p56 = pneg %p20
    $region15: #{tpu_custom_call.1} parent=1 // pred_check_branch
      %58 = sbr.rel (%p56) target = $region17
    $region16: #{tpu_custom_call.1} parent=1 // pred_region
      %v59 = vld [vmem:[#allocation2] sm:$0xff]
      %v60 = vld [vmem:[#allocation3] sm:$0xff]
      %v61 = vlog2.pop %v60
      %v62 = vmul.f32 %v61, 0.6931472
      %v63 = vadd.f32 %v59, %v62
      %v64 = vld [vmem:[%s1] sm:$0xff]
      %v65 = vsub.f32 %v63, %v64
      %66 = vst.msk [vmem:[%s1] sm:$0xff] %vm53, %v65
    $region17: #{tpu_custom_call.1} parent=1 // pred_fallthru
      _
    // Predicated region
    $region18: #{tpu_custom_call.1} parent=1 // pred_check
      _
    $region19: #{tpu_custom_call.1} parent=1 // pred_check_branch
      %68 = sbr.rel (0) target = $region21
    $region20: #{tpu_custom_call.1} parent=1 // pred_region
      _
    $region21: #{tpu_custom_call.1} parent=1 // pred_fallthru
      _
    // Predicated region
    $region22: #{tpu_custom_call.1} parent=1 // pred_check
      _
    $region23: #{tpu_custom_call.1} parent=1 // pred_check_branch
      %70 = sbr.rel (0) target = $region25
    $region24: #{tpu_custom_call.1} parent=1 // pred_region
      _
    $region25: #{tpu_custom_call.1} parent=1 // pred_fallthru
      _
    %71 = vsyncpa [#allocation5], 1

</llo_original>
